<compile_context>
chip_gen: v7x
topology: tpu7x:2x2x1
jax: 0.10.0
libtpu: 0.0.40
codegen_flags: <defaults>
</compile_context>

<pallas_src>
import functools

import jax
import jax.numpy as jnp
from jax.experimental import pallas as pl
from jax.experimental.pallas import tpu as pltpu


def _se_kernel(alpha_ref, x_ref, w1t_ref, b1c_ref, w2t_ref, b2c_ref, o_ref,
               *, inv_hw, tb):
    """One grid step: TB images, all channels, lane-padded spatial axis.

    Block layouts (sublane, lane):
      x_ref / o_ref   : (TB, C, HWp)  C on sublanes, HWp (mult. of 128) on lanes
      w1t_ref         : (Cr, C)       column-form excitation weights
      w2t_ref         : (C, Cr)
      b1c_ref / b2c_ref: (Cr, 1) / (C, 1)
      alpha_ref       : (1, 1) SMEM scalar (shared PReLU slope)
    """
    # ---- squeeze: global average pool --------------------------------------
    # Padded lanes are zero, so lane-sum * (1 / true_HW) is the exact mean.
    xf = x_ref[...].astype(jnp.float32)                  # upcast once (v5e-safe)
    pooled = jnp.sum(xf, axis=-1) * inv_hw               # (TB, C)
    # Single tiny (TB, C) -> (C, TB) relayout; from here on channels stay on
    # sublanes, matching the layout of x / out.
    p_col = pooled.T                                     # (C, TB)

    # ---- excitation MLP (column form) --------------------------------------
    alpha = alpha_ref[0, 0]
    h = jnp.dot(w1t_ref[...], p_col,
                preferred_element_type=jnp.float32) + b1c_ref[...]   # (Cr, TB)
    h = jnp.where(h >= 0.0, h, alpha * h)                # PReLU, shared alpha
    s = jnp.dot(w2t_ref[...], h,
                preferred_element_type=jnp.float32) + b2c_ref[...]   # (C, TB)
    s = jax.nn.sigmoid(s)                                # per-(channel, image) gate

    # ---- scale: out[b] = x[b] * s[:, b] -------------------------------------
    # Each gate column is already a (C, 1) sublane vector -> lane-broadcast
    # multiply against the (C, HWp) image slab; no transpose of the gate.
    for b in range(tb):                                  # tb is small and static
        xb = x_ref[b].astype(jnp.float32)                # (C, HWp)
        o_ref[b] = (xb * s[:, b:b + 1]).astype(o_ref.dtype)


def _choose_tb(batch, per_image_bytes,
               vmem_budget=24 * 1024 * 1024, max_tb=16):
    """Pick images-per-grid-step: biggest tile that fits the VMEM budget
    (in + out, double-buffered ~= 4 * TB * C * HWp * bytes), capped so the
    scale loop stays short and the batch grid keeps >= 2 parallel steps."""
    cap = max(1, min(max_tb, vmem_budget // (4 * per_image_bytes)))
    tb = int(min(batch, cap))
    if batch >= 2:
        tb = min(tb, -(-batch // 2))     # >= 2 grid steps for v7x's 2 TCs
    while batch % tb:
        tb -= 1
    return tb


@jax.jit
def se_block(x, w1, b1, alpha, w2, b2):
    """x: (B, C, H, W) f32 or bf16. w1: (C, Cr), b1: (1, Cr), w2: (Cr, C),
    b2: (1, C) (all stored (in, out) == PyTorch weight.T), alpha: (1, 1)."""
    B, C, H, W = x.shape
    HW = H * W
    Cr = w1.shape[1]

    # Lane-dense spatial axis: pad HW up to a multiple of 128 (zeros).
    HWp = ((HW + 127) // 128) * 128
    x3 = x.reshape(B, C, HW)
    if HWp != HW:
        x3 = jnp.pad(x3, ((0, 0), (0, 0), (0, HWp - HW)))

    itemsize = jnp.dtype(x.dtype).itemsize
    tb = _choose_tb(B, C * HWp * itemsize)

    # Column-form (channel-on-sublane) excitation parameters.
    w1t = jnp.transpose(w1)            # (Cr, C)  == PyTorch fc1.weight layout
    w2t = jnp.transpose(w2)            # (C, Cr)  == PyTorch fc2.weight layout
    b1c = jnp.reshape(b1, (Cr, 1))
    b2c = jnp.reshape(b2, (C, 1))

    kernel = functools.partial(_se_kernel, inv_hw=1.0 / HW, tb=tb)

    out = pl.pallas_call(
        kernel,
        out_shape=jax.ShapeDtypeStruct((B, C, HWp), x.dtype),
        grid=(B // tb,),
        in_specs=[
            pl.BlockSpec(memory_space=pltpu.MemorySpace.SMEM),   # alpha scalar
            pl.BlockSpec((tb, C, HWp), lambda i: (i, 0, 0)),     # x (TB images)
            # Weight/bias blocks are grid-invariant and tiny; at large C they
            # could be single-buffered (pl.Buffered(1)) or preloaded to scratch.
            pl.BlockSpec((Cr, C), lambda i: (0, 0)),             # W1^T
            pl.BlockSpec((Cr, 1), lambda i: (0, 0)),             # b1 (column)
            pl.BlockSpec((C, Cr), lambda i: (0, 0)),             # W2^T
            pl.BlockSpec((C, 1), lambda i: (0, 0)),              # b2 (column)
        ],
        out_specs=pl.BlockSpec((tb, C, HWp), lambda i: (i, 0, 0)),
        compiler_params=pltpu.CompilerParams(
            dimension_semantics=("parallel",)),
    )(alpha, x3, w1t, b1c, w2t, b2c)

    if HWp != HW:
        out = out[:, :, :HW]
    return out.reshape(B, C, H, W)


def _reference(x, w1, b1, alpha, w2, b2):
    # Pure-JAX reference mirroring the PyTorch SEBlock forward.
    y = jnp.mean(x.astype(jnp.float32), axis=(2, 3))         # (B, C)
    h = y @ w1 + b1                                          # (B, Cr)
    h = jnp.where(h >= 0, h, alpha[0, 0] * h)
    s = jax.nn.sigmoid(h @ w2 + b2)                          # (B, C)
    return x.astype(jnp.float32) * s[:, :, None, None]


if __name__ == "__main__":
    key = jax.random.PRNGKey(0)

    def make_inputs(k, B, C, H, W, reduction=4):
        Cr = C // reduction
        kx, kw1, kb1, kw2, kb2 = jax.random.split(k, 5)
        x = jax.random.normal(kx, (B, C, H, W), dtype=jnp.float32)
        w1 = jax.random.normal(kw1, (C, Cr), dtype=jnp.float32) * 0.1
        b1 = jax.random.normal(kb1, (1, Cr), dtype=jnp.float32) * 0.1
        w2 = jax.random.normal(kw2, (Cr, C), dtype=jnp.float32) * 0.1
        b2 = jax.random.normal(kb2, (1, C), dtype=jnp.float32) * 0.1
        alpha = jnp.full((1, 1), 0.25, dtype=jnp.float32)    # nn.PReLU() default
        return x, w1, b1, alpha, w2, b2

    k1, k2, _ = jax.random.split(key, 3)

    # 1) Main check: HW = 256 (already lane-dense), B=8 -> TB=4, grid of 2.
    args = make_inputs(k1, B=8, C=32, H=16, W=16)
    out = se_block(*args)
    jax.block_until_ready(out)
    ref = _reference(*args)
    assert out.shape == ref.shape
    assert jnp.allclose(out, ref, atol=1e-3, rtol=1e-3), "f32 mismatch vs reference"

    # 2) Padded-lane path: HW = 49 -> padded to 128; mean uses true HW.
    args2 = make_inputs(k2, B=4, C=32, H=7, W=7)
    out2 = se_block(*args2)
    jax.block_until_ready(out2)
    ref2 = _reference(*args2)
    assert out2.shape == ref2.shape
    assert jnp.allclose(out2, ref2, atol=1e-3, rtol=1e-3), "padded-HW mismatch"

    # 3) bf16 I/O smoke test (internal math stays f32).
    args_bf16 = (args[0].astype(jnp.bfloat16),) + args[1:]
    out_bf16 = se_block(*args_bf16)
    jax.block_until_ready(out_bf16)
    assert out_bf16.dtype == jnp.bfloat16
    assert jnp.allclose(out_bf16.astype(jnp.float32), ref,
                        atol=5e-2, rtol=5e-2), "bf16 mismatch vs reference"

    print("KERNEL_OK")
</pallas_src>

<mosaic_0001>
module attributes {stable_mosaic.version = 11 : i64} {
  func.func @_se_kernel(%arg0: i32, %arg1: memref<1x1xf32, #tpu.memory_space<smem>>, %arg2: memref<4x32x256xf32, #tpu.memory_space<vmem>>, %arg3: memref<8x32xf32, #tpu.memory_space<vmem>>, %arg4: memref<8x1xf32, #tpu.memory_space<vmem>>, %arg5: memref<32x8xf32, #tpu.memory_space<vmem>>, %arg6: memref<32x1xf32, #tpu.memory_space<vmem>>, %arg7: memref<4x32x256xf32, #tpu.memory_space<vmem>>) attributes {dimension_semantics = [#tpu.dimension_semantics<parallel>], iteration_bounds = array<i64: 2>, scalar_prefetch = 0 : i64, scratch_operands = 0 : i64, tpu.core_type = #tpu.core_type<tc>, window_params = [{transform_indices = @transform_0, window_bounds = array<i64: 1, 1>}, {transform_indices = @transform_1, window_bounds = array<i64: 4, 32, 256>}, {pipeline_mode = #tpu.pipeline_mode<synchronous>, transform_indices = @transform_2, window_bounds = array<i64: 8, 32>}, {pipeline_mode = #tpu.pipeline_mode<synchronous>, transform_indices = @transform_3, window_bounds = array<i64: 8, 1>}, {pipeline_mode = #tpu.pipeline_mode<synchronous>, transform_indices = @transform_4, window_bounds = array<i64: 32, 8>}, {pipeline_mode = #tpu.pipeline_mode<synchronous>, transform_indices = @transform_5, window_bounds = array<i64: 32, 1>}, {transform_indices = @transform_6, window_bounds = array<i64: 4, 32, 256>}]} {
    %c0 = arith.constant 0 : index
    %c0_0 = arith.constant 0 : index
    %c0_1 = arith.constant 0 : index
    %0 = vector.load %arg2[%c0, %c0_0, %c0_1] : memref<4x32x256xf32, #tpu.memory_space<vmem>>, vector<4x32x256xf32>
    %cst = arith.constant dense<0.000000e+00> : vector<4x32xf32>
    %1 = vector.multi_reduction <add>, %0, %cst [2] : vector<4x32x256xf32> to vector<4x32xf32>
    %cst_2 = arith.constant 3.906250e-03 : f32
    %2 = vector.broadcast %cst_2 : f32 to vector<4x32xf32>
    %3 = arith.mulf %1, %2 : vector<4x32xf32>
    %4 = tpu.transpose %3, [1, 0] : vector<4x32xf32> -> vector<32x4xf32>
    %c0_3 = arith.constant 0 : index
    %c0_4 = arith.constant 0 : index
    %5 = memref.load %arg1[%c0_3, %c0_4] : memref<1x1xf32, #tpu.memory_space<smem>>
    %c0_5 = arith.constant 0 : index
    %c0_6 = arith.constant 0 : index
    %6 = vector.load %arg3[%c0_5, %c0_6] : memref<8x32xf32, #tpu.memory_space<vmem>>, vector<8x32xf32>
    %cst_7 = arith.constant dense<0.000000e+00> : vector<8x4xf32>
    %7 = tpu.matmul %6, %4, %cst_7 {dimension_numbers = #tpu.dot_dimension_numbers<[1], [0], [0], [1], [0, 0, 1, 1], [], []>} : vector<8x32xf32>, vector<32x4xf32>, vector<8x4xf32> -> vector<8x4xf32>
    %c0_8 = arith.constant 0 : index
    %c0_9 = arith.constant 0 : index
    %8 = vector.load %arg4[%c0_8, %c0_9] : memref<8x1xf32, #tpu.memory_space<vmem>>, vector<8x1xf32>
    %9 = vector.broadcast %8 : vector<8x1xf32> to vector<8x4xf32>
    %10 = arith.addf %7, %9 : vector<8x4xf32>
    %cst_10 = arith.constant 0.000000e+00 : f32
    %11 = vector.broadcast %cst_10 : f32 to vector<8x4xf32>
    %12 = arith.cmpf oge, %10, %11 : vector<8x4xf32>
    %13 = vector.broadcast %5 : f32 to vector<8x4xf32>
    %14 = arith.mulf %13, %10 : vector<8x4xf32>
    %15 = arith.select %12, %10, %14 : vector<8x4xi1>, vector<8x4xf32>
    %c0_11 = arith.constant 0 : index
    %c0_12 = arith.constant 0 : index
    %16 = vector.load %arg5[%c0_11, %c0_12] : memref<32x8xf32, #tpu.memory_space<vmem>>, vector<32x8xf32>
    %cst_13 = arith.constant dense<0.000000e+00> : vector<32x4xf32>
    %17 = tpu.matmul %16, %15, %cst_13 {dimension_numbers = #tpu.dot_dimension_numbers<[1], [0], [0], [1], [0, 0, 1, 1], [], []>} : vector<32x8xf32>, vector<8x4xf32>, vector<32x4xf32> -> vector<32x4xf32>
    %c0_14 = arith.constant 0 : index
    %c0_15 = arith.constant 0 : index
    %18 = vector.load %arg6[%c0_14, %c0_15] : memref<32x1xf32, #tpu.memory_space<vmem>>, vector<32x1xf32>
    %19 = vector.broadcast %18 : vector<32x1xf32> to vector<32x4xf32>
    %20 = arith.addf %17, %19 : vector<32x4xf32>
    %21 = arith.negf %20 : vector<32x4xf32>
    %22 = math.exp %21 : vector<32x4xf32>
    %cst_16 = arith.constant 1.000000e+00 : f32
    %23 = vector.broadcast %cst_16 : f32 to vector<32x4xf32>
    %24 = arith.addf %23, %22 : vector<32x4xf32>
    %25 = arith.divf %23, %24 : vector<32x4xf32>
    %c0_17 = arith.constant 0 : index
    %c0_18 = arith.constant 0 : index
    %c0_19 = arith.constant 0 : index
    %26 = vector.load %arg2[%c0_17, %c0_18, %c0_19] : memref<4x32x256xf32, #tpu.memory_space<vmem>>, vector<1x32x256xf32>
    %27 = vector.shape_cast %26 : vector<1x32x256xf32> to vector<32x256xf32>
    %28 = vector.extract_strided_slice %25 {offsets = [0, 0], sizes = [32, 1], strides = [1, 1]} : vector<32x4xf32> to vector<32x1xf32>
    %29 = vector.broadcast %28 : vector<32x1xf32> to vector<32x256xf32>
    %30 = arith.mulf %27, %29 : vector<32x256xf32>
    %c0_20 = arith.constant 0 : index
    %c0_21 = arith.constant 0 : index
    %c0_22 = arith.constant 0 : index
    %31 = vector.load %arg7[%c0_20, %c0_21, %c0_22] : memref<4x32x256xf32, #tpu.memory_space<vmem>>, vector<1x32x256xf32>
    %32 = vector.shape_cast %31 : vector<1x32x256xf32> to vector<32x256xf32>
    %33 = vector.shape_cast %30 : vector<32x256xf32> to vector<1x32x256xf32>
    tpu.vector_store %arg7[%c0_20, %c0_21, %c0_22], %33 {strides = array<i32>} : memref<4x32x256xf32, #tpu.memory_space<vmem>>, vector<1x32x256xf32>,
    %c1 = arith.constant 1 : index
    %c0_23 = arith.constant 0 : index
    %c0_24 = arith.constant 0 : index
    %34 = vector.load %arg2[%c1, %c0_23, %c0_24] : memref<4x32x256xf32, #tpu.memory_space<vmem>>, vector<1x32x256xf32>
    %35 = vector.shape_cast %34 : vector<1x32x256xf32> to vector<32x256xf32>
    %36 = vector.extract_strided_slice %25 {offsets = [0, 1], sizes = [32, 1], strides = [1, 1]} : vector<32x4xf32> to vector<32x1xf32>
    %37 = vector.broadcast %36 : vector<32x1xf32> to vector<32x256xf32>
    %38 = arith.mulf %35, %37 : vector<32x256xf32>
    %c1_25 = arith.constant 1 : index
    %c0_26 = arith.constant 0 : index
    %c0_27 = arith.constant 0 : index
    %39 = vector.load %arg7[%c1_25, %c0_26, %c0_27] : memref<4x32x256xf32, #tpu.memory_space<vmem>>, vector<1x32x256xf32>
    %40 = vector.shape_cast %39 : vector<1x32x256xf32> to vector<32x256xf32>
    %41 = vector.shape_cast %38 : vector<32x256xf32> to vector<1x32x256xf32>
    tpu.vector_store %arg7[%c1_25, %c0_26, %c0_27], %41 {strides = array<i32>} : memref<4x32x256xf32, #tpu.memory_space<vmem>>, vector<1x32x256xf32>,
    %c2 = arith.constant 2 : index
    %c0_28 = arith.constant 0 : index
    %c0_29 = arith.constant 0 : index
    %42 = vector.load %arg2[%c2, %c0_28, %c0_29] : memref<4x32x256xf32, #tpu.memory_space<vmem>>, vector<1x32x256xf32>
    %43 = vector.shape_cast %42 : vector<1x32x256xf32> to vector<32x256xf32>
    %44 = vector.extract_strided_slice %25 {offsets = [0, 2], sizes = [32, 1], strides = [1, 1]} : vector<32x4xf32> to vector<32x1xf32>
    %45 = vector.broadcast %44 : vector<32x1xf32> to vector<32x256xf32>
    %46 = arith.mulf %43, %45 : vector<32x256xf32>
    %c2_30 = arith.constant 2 : index
    %c0_31 = arith.constant 0 : index
    %c0_32 = arith.constant 0 : index
    %47 = vector.load %arg7[%c2_30, %c0_31, %c0_32] : memref<4x32x256xf32, #tpu.memory_space<vmem>>, vector<1x32x256xf32>
    %48 = vector.shape_cast %47 : vector<1x32x256xf32> to vector<32x256xf32>
    %49 = vector.shape_cast %46 : vector<32x256xf32> to vector<1x32x256xf32>
    tpu.vector_store %arg7[%c2_30, %c0_31, %c0_32], %49 {strides = array<i32>} : memref<4x32x256xf32, #tpu.memory_space<vmem>>, vector<1x32x256xf32>,
    %c3 = arith.constant 3 : index
    %c0_33 = arith.constant 0 : index
    %c0_34 = arith.constant 0 : index
    %50 = vector.load %arg2[%c3, %c0_33, %c0_34] : memref<4x32x256xf32, #tpu.memory_space<vmem>>, vector<1x32x256xf32>
    %51 = vector.shape_cast %50 : vector<1x32x256xf32> to vector<32x256xf32>
    %52 = vector.extract_strided_slice %25 {offsets = [0, 3], sizes = [32, 1], strides = [1, 1]} : vector<32x4xf32> to vector<32x1xf32>
    %53 = vector.broadcast %52 : vector<32x1xf32> to vector<32x256xf32>
    %54 = arith.mulf %51, %53 : vector<32x256xf32>
    %c3_35 = arith.constant 3 : index
    %c0_36 = arith.constant 0 : index
    %c0_37 = arith.constant 0 : index
    %55 = vector.load %arg7[%c3_35, %c0_36, %c0_37] : memref<4x32x256xf32, #tpu.memory_space<vmem>>, vector<1x32x256xf32>
    %56 = vector.shape_cast %55 : vector<1x32x256xf32> to vector<32x256xf32>
    %57 = vector.shape_cast %54 : vector<32x256xf32> to vector<1x32x256xf32>
    tpu.vector_store %arg7[%c3_35, %c0_36, %c0_37], %57 {strides = array<i32>} : memref<4x32x256xf32, #tpu.memory_space<vmem>>, vector<1x32x256xf32>,
    return
  }
  func.func @transform_0(%arg0: i32) -> (i32, i32) {
    %c0_i32 = arith.constant 0 : i32
    %c0_i32_0 = arith.constant 0 : i32
    %c0_i32_1 = arith.constant 0 : i32
    return %c0_i32, %c0_i32_0 : i32, i32
  }
  func.func @transform_1(%arg0: i32) -> (i32, i32, i32) {
    %c0_i32 = arith.constant 0 : i32
    %c0_i32_0 = arith.constant 0 : i32
    %c0_i32_1 = arith.constant 0 : i32
    return %arg0, %c0_i32, %c0_i32_0 : i32, i32, i32
  }
  func.func @transform_2(%arg0: i32) -> (i32, i32) {
    %c0_i32 = arith.constant 0 : i32
    %c0_i32_0 = arith.constant 0 : i32
    %c0_i32_1 = arith.constant 0 : i32
    return %c0_i32, %c0_i32_0 : i32, i32
  }
  func.func @transform_3(%arg0: i32) -> (i32, i32) {
    %c0_i32 = arith.constant 0 : i32
    %c0_i32_0 = arith.constant 0 : i32
    %c0_i32_1 = arith.constant 0 : i32
    return %c0_i32, %c0_i32_0 : i32, i32
  }
  func.func @transform_4(%arg0: i32) -> (i32, i32) {
    %c0_i32 = arith.constant 0 : i32
    %c0_i32_0 = arith.constant 0 : i32
    %c0_i32_1 = arith.constant 0 : i32
    return %c0_i32, %c0_i32_0 : i32, i32
  }
  func.func @transform_5(%arg0: i32) -> (i32, i32) {
    %c0_i32 = arith.constant 0 : i32
    %c0_i32_0 = arith.constant 0 : i32
    %c0_i32_1 = arith.constant 0 : i32
    return %c0_i32, %c0_i32_0 : i32, i32
  }
  func.func @transform_6(%arg0: i32) -> (i32, i32, i32) {
    %c0_i32 = arith.constant 0 : i32
    %c0_i32_0 = arith.constant 0 : i32
    %c0_i32_1 = arith.constant 0 : i32
    return %arg0, %c0_i32, %c0_i32_0 : i32, i32, i32
  }
}

</mosaic_0001>

<llo_original>
// kernel: se_block.1
$region0: #{se_block.1}
  #allocation0 [shape = 'u32[]', space=smem, size = 0x4, offset = 0x4, fixed_abs, tag = 'smem constant byte address 0x4 - core index']
  #allocation1 [shape = 'u32[144,128]{1,0:T(1,128)}', space=vmem, size = 0x12000, scoped, tag = 'internal scratch']
  #allocation2 [shape = 'f32[1,1]{1,0:T(1,128)S(6)}', space=smem, size = 0x200, scoped, tag = 'scoped memory for se_block.1']
  %s0 = inlined_call_operand.<no memory space> [shape: f32[1,1], index: 0, kind: input, shape index: {}]
  %s1 = inlined_call_operand.vmem [shape: f32[8,32,256], index: 1, kind: input, shape index: {}]
  %s2 = inlined_call_operand.vmem [shape: f32[8,32], index: 2, kind: input, shape index: {}]
  %s3 = inlined_call_operand.vmem [shape: f32[8,1], index: 3, kind: input, shape index: {}]
  %s4 = inlined_call_operand.vmem [shape: f32[32,8], index: 4, kind: input, shape index: {}]
  %s5 = inlined_call_operand.vmem [shape: f32[32,1], index: 5, kind: input, shape index: {}]
  %s6 = inlined_call_operand.vmem [shape: f32[8,32,256], index: 6, kind: output, shape index: {}]
  %s7 = sld [smem:[#allocation0]]
  $region57: #{se_block.1} parent=0
    _
  %s9 = ssub.s32 1, %s7
  %s10 = scalar_select 0, %s9, %s7
  %11 = sst [smem:[#allocation2]] %s0
  loop: start=0, step=1, limit=4
  $region2: #{se_block.1} parent=0 // loop_pre_header
    _
  $region3: #{se_block.1} parent=0 // loop_header
    %s13 = sphi 0, %s17
    %p14 = scmp.ge.s32.totalorder %s13, 4
    %s21 = sphi 0, %s21
    %s23 = sphi 0, %s21
    %s24 = sphi 0, %s23
    %s38 = sphi 0, %s24
    %s44 = sphi 0, %s46
    %s47 = sphi 0, %s44
    %s48 = sphi 0, %s47
    %s64 = sphi 0, %s48
    %s68 = sphi 0, %s68
    %s70 = sphi 0, %s68
    %s71 = sphi 0, %s70
    %s85 = sphi 0, %s71
    %s89 = sphi 0, %s89
    %s91 = sphi 0, %s89
    %s92 = sphi 0, %s91
    %s106 = sphi 0, %s92
    %s110 = sphi 0, %s110
    %s112 = sphi 0, %s110
    %s113 = sphi 0, %s112
    %s127 = sphi 0, %s113
    %s131 = sphi 0, %s131
    %s133 = sphi 0, %s131
    %s134 = sphi 0, %s133
    %s148 = sphi 0, %s134
    %s154 = sphi 0, %s156
    %s157 = sphi 0, %s154
    %s158 = sphi 0, %s157
    %s174 = sphi 0, %s158
  $region4: #{se_block.1} parent=0 // loop_header_branch
    %16 = sbr.rel (%p14) target = $region8
  $region5: #{se_block.1} parent=0 // loop_body
    %s18 = ssub.s32 %s13, 1
    %s19 = ssub.s32 %s13, 2
    %s20 = sadd.s32 %s13, 1
    %s22 = sadd.s32 %s21, 1
    %p25 = scmp.eq.s32.totalorder %s13, 1
    %p26 = scmp.ne.s32.totalorder %s21, %s23
    %p27 = scmp.eq.s32.totalorder %s13, 0
    %p28 = por %p26, %p27
    %p29 = scmp.ne.s32.totalorder %s21, %s23
    %p30 = scmp.eq.s32.totalorder %s18, 1
    %p31 = por %p29, %p30
    %p32 = scmp.ne.s32.totalorder %s23, %s24
    %p33 = scmp.eq.s32.totalorder %s18, 0
    %p34 = por %p32, %p33
    %p35 = scmp.ne.s32.totalorder %s23, %s24
    %p36 = scmp.eq.s32.totalorder %s19, 1
    %p37 = por %p35, %p36
    %p39 = scmp.ne.s32.totalorder %s24, %s38
    %p40 = scmp.eq.s32.totalorder %s19, 0
    %p41 = por %p39, %p40
    %s42 = ssub.s32 %s13, %s20
    %p43 = scmp.eq.s32.totalorder %s42, 0
    %s45 = sadd.s32 %s44, 1
    %s46 = scalar_select %p43, %s44, %s45
    %p49 = pneg %p43
    %p50 = scmp.eq.s32.totalorder %s13, 1
    %p51 = por %p49, %p50
    %p52 = scmp.ne.s32.totalorder %s44, %s47
    %p53 = scmp.eq.s32.totalorder %s13, 0
    %p54 = por %p52, %p53
    %p55 = scmp.ne.s32.totalorder %s44, %s47
    %p56 = scmp.eq.s32.totalorder %s18, 1
    %p57 = por %p55, %p56
    %p58 = scmp.ne.s32.totalorder %s47, %s48
    %p59 = scmp.eq.s32.totalorder %s18, 0
    %p60 = por %p58, %p59
    %p61 = scmp.ne.s32.totalorder %s47, %s48
    %p62 = scmp.eq.s32.totalorder %s19, 1
    %p63 = por %p61, %p62
    %p65 = scmp.ne.s32.totalorder %s48, %s64
    %p66 = scmp.eq.s32.totalorder %s19, 0
    %p67 = por %p65, %p66
    %s69 = sadd.s32 %s68, 1
    %p72 = scmp.eq.s32.totalorder %s13, 1
    %p73 = scmp.ne.s32.totalorder %s68, %s70
    %p74 = scmp.eq.s32.totalorder %s13, 0
    %p75 = por %p73, %p74
    %p76 = scmp.ne.s32.totalorder %s68, %s70
    %p77 = scmp.eq.s32.totalorder %s18, 1
    %p78 = por %p76, %p77
    %p79 = scmp.ne.s32.totalorder %s70, %s71
    %p80 = scmp.eq.s32.totalorder %s18, 0
    %p81 = por %p79, %p80
    %p82 = scmp.ne.s32.totalorder %s70, %s71
    %p83 = scmp.eq.s32.totalorder %s19, 1
    %p84 = por %p82, %p83
    %p86 = scmp.ne.s32.totalorder %s71, %s85
    %p87 = scmp.eq.s32.totalorder %s19, 0
    %p88 = por %p86, %p87
    %s90 = sadd.s32 %s89, 1
    %p93 = scmp.eq.s32.totalorder %s13, 1
    %p94 = scmp.ne.s32.totalorder %s89, %s91
    %p95 = scmp.eq.s32.totalorder %s13, 0
    %p96 = por %p94, %p95
    %p97 = scmp.ne.s32.totalorder %s89, %s91
    %p98 = scmp.eq.s32.totalorder %s18, 1
    %p99 = por %p97, %p98
    %p100 = scmp.ne.s32.totalorder %s91, %s92
    %p101 = scmp.eq.s32.totalorder %s18, 0
    %p102 = por %p100, %p101
    %p103 = scmp.ne.s32.totalorder %s91, %s92
    %p104 = scmp.eq.s32.totalorder %s19, 1
    %p105 = por %p103, %p104
    %p107 = scmp.ne.s32.totalorder %s92, %s106
    %p108 = scmp.eq.s32.totalorder %s19, 0
    %p109 = por %p107, %p108
    %s111 = sadd.s32 %s110, 1
    %p114 = scmp.eq.s32.totalorder %s13, 1
    %p115 = scmp.ne.s32.totalorder %s110, %s112
    %p116 = scmp.eq.s32.totalorder %s13, 0
    %p117 = por %p115, %p116
    %p118 = scmp.ne.s32.totalorder %s110, %s112
    %p119 = scmp.eq.s32.totalorder %s18, 1
    %p120 = por %p118, %p119
    %p121 = scmp.ne.s32.totalorder %s112, %s113
    %p122 = scmp.eq.s32.totalorder %s18, 0
    %p123 = por %p121, %p122
    %p124 = scmp.ne.s32.totalorder %s112, %s113
    %p125 = scmp.eq.s32.totalorder %s19, 1
    %p126 = por %p124, %p125
    %p128 = scmp.ne.s32.totalorder %s113, %s127
    %p129 = scmp.eq.s32.totalorder %s19, 0
    %p130 = por %p128, %p129
    %s132 = sadd.s32 %s131, 1
    %p135 = scmp.eq.s32.totalorder %s13, 1
    %p136 = scmp.ne.s32.totalorder %s131, %s133
    %p137 = scmp.eq.s32.totalorder %s13, 0
    %p138 = por %p136, %p137
    %p139 = scmp.ne.s32.totalorder %s131, %s133
    %p140 = scmp.eq.s32.totalorder %s18, 1
    %p141 = por %p139, %p140
    %p142 = scmp.ne.s32.totalorder %s133, %s134
    %p143 = scmp.eq.s32.totalorder %s18, 0
    %p144 = por %p142, %p143
    %p145 = scmp.ne.s32.totalorder %s133, %s134
    %p146 = scmp.eq.s32.totalorder %s19, 1
    %p147 = por %p145, %p146
    %p149 = scmp.ne.s32.totalorder %s134, %s148
    %p150 = scmp.eq.s32.totalorder %s19, 0
    %p151 = por %p149, %p150
    %s152 = ssub.s32 %s13, %s20
    %p153 = scmp.eq.s32.totalorder %s152, 0
    %s155 = sadd.s32 %s154, 1
    %s156 = scalar_select %p153, %s154, %s155
    %p159 = pneg %p153
    %p160 = scmp.eq.s32.totalorder %s13, 1
    %p161 = por %p159, %p160
    %p162 = scmp.ne.s32.totalorder %s154, %s157
    %p163 = scmp.eq.s32.totalorder %s13, 0
    %p164 = por %p162, %p163
    %p165 = scmp.ne.s32.totalorder %s154, %s157
    %p166 = scmp.eq.s32.totalorder %s18, 1
    %p167 = por %p165, %p166
    %p168 = scmp.ne.s32.totalorder %s157, %s158
    %p169 = scmp.eq.s32.totalorder %s18, 0
    %p170 = por %p168, %p169
    %p171 = scmp.ne.s32.totalorder %s157, %s158
    %p172 = scmp.eq.s32.totalorder %s19, 1
    %p173 = por %p171, %p172
    %p175 = scmp.ne.s32.totalorder %s158, %s174
    %p176 = scmp.eq.s32.totalorder %s19, 0
    %p177 = por %p175, %p176
    %p178 = scmp.le.s32.totalorder 1, %s13
    %p179 = scmp.lt.s32.totalorder %s13, 3
    %p180 = pnand %p178, %p179
    %p181 = pneg %p180
    // Predicated region
    $region9: #{se_block.1} parent=5 // pred_check
      _
    $region10: #{se_block.1} parent=5 // pred_check_branch
      %183 = sbr.rel (%p180) target = $region12
    $region11: #{se_block.1} parent=5 // pred_region
      %s184 = ssub.s32 %s13, 1
      // Predicated region
      $region13: #{se_block.1} parent=11 // pred_check
        %p185 = pneg %p34
      $region14: #{se_block.1} parent=11 // pred_check_branch
        %187 = sbr.rel (%p185) target = $region16
      $region15: #{se_block.1} parent=11 // pred_region
        _
      $region16: #{se_block.1} parent=11 // pred_fallthru
        _
      // Predicated region
      $region17: #{se_block.1} parent=11 // pred_check
        %p188 = pneg %p81
      $region18: #{se_block.1} parent=11 // pred_check_branch
        %190 = sbr.rel (%p188) target = $region20
      $region19: #{se_block.1} parent=11 // pred_region
        _
      $region20: #{se_block.1} parent=11 // pred_fallthru
        _
      // Predicated region
      $region21: #{se_block.1} parent=11 // pred_check
        %p191 = pneg %p102
      $region22: #{se_block.1} parent=11 // pred_check_branch
        %193 = sbr.rel (%p191) target = $region24
      $region23: #{se_block.1} parent=11 // pred_region
        _
      $region24: #{se_block.1} parent=11 // pred_fallthru
        _
      // Predicated region
      $region25: #{se_block.1} parent=11 // pred_check
        %p194 = pneg %p123
      $region26: #{se_block.1} parent=11 // pred_check_branch
        %196 = sbr.rel (%p194) target = $region28
      $region27: #{se_block.1} parent=11 // pred_region
        _
      $region28: #{se_block.1} parent=11 // pred_fallthru
        _
      // Predicated region
      $region29: #{se_block.1} parent=11 // pred_check
        %p197 = pneg %p144
      $region30: #{se_block.1} parent=11 // pred_check_branch
        %199 = sbr.rel (%p197) target = $region32
      $region31: #{se_block.1} parent=11 // pred_region
        _
      $region32: #{se_block.1} parent=11 // pred_fallthru
        _
    $region12: #{se_block.1} parent=5 // pred_fallthru
      _
    %p200 = scmp.lt.s32.totalorder %s13, 2
    // Predicated region
    $region33: #{se_block.1} parent=5 // pred_check
      %p201 = pneg %p200
    $region34: #{se_block.1} parent=5 // pred_check_branch
      %203 = sbr.rel (%p201) target = $region36
    $region35: #{se_block.1} parent=5 // pred_region
      // Predicated region
      $region37: #{se_block.1} parent=35 // pred_check
        %p204 = pneg %p54
      $region38: #{se_block.1} parent=35 // pred_check_branch
        %206 = sbr.rel (%p204) target = $region40
      $region39: #{se_block.1} parent=35 // pred_region
        %s207 = smul.u32 4, %s13
        %p208 = scmp.lt.s32.totalorder %s207, 7
        %s209 = scalar_select %p208, %s207, 7
        %s210 = smul.addr %s209, 8
        %s211 = smul.addr %s210, 8
        %s212 = scalar_lea.vmem %s1, %s211
        %s213 = smul.u32 4, %s13
      $region40: #{se_block.1} parent=35 // pred_fallthru
        _
    $region36: #{se_block.1} parent=5 // pred_fallthru
      _
    %p214 = scmp.le.s32.totalorder 1, %s13
    %p215 = scmp.lt.s32.totalorder %s13, 3
    %p216 = pnand %p214, %p215
    %p217 = pneg %p216
    // Predicated region
    $region41: #{se_block.1} parent=5 // pred_check
      _
    $region42: #{se_block.1} parent=5 // pred_check_branch
      %219 = sbr.rel (%p216) target = $region44
    $region43: #{se_block.1} parent=5 // pred_region
      %s220 = ssub.s32 %s13, 1
      %p221 = pneg %p34
      %p222 = pneg %p31
      %s223 = smul.u32 4, %s18
      %p224 = scmp.lt.s32.totalorder %s223, 7
      %s225 = scalar_select %p224, %s223, 7
      %s226 = smul.addr %s225, 8
      %s227 = smul.addr %s226, 8
      %s228 = scalar_lea.vmem %s1, %s227
      %p229 = pneg %p60
      %p230 = pneg %p57
      %p231 = pneg %p81
      %p232 = pneg %p78
      %p233 = pneg %p102
      %p234 = pneg %p99
      %p235 = pneg %p123
      %p236 = pneg %p120
      %p237 = pneg %p144
      %p238 = pneg %p141
      %p239 = pneg %p170
      %p240 = pneg %p167
      %s241 = smul.u32 4, %s18
      %p242 = scmp.lt.s32.totalorder %s241, 7
      %s243 = scalar_select %p242, %s241, 7
      %s244 = smul.addr %s243, 8
      %s245 = smul.addr %s244, 8
      %s246 = scalar_lea.vmem %s6, %s245
      %s247 = smul.u32 4, %s18
      %p248 = scmp.lt.s32.totalorder %s247, 7
      %s249 = scalar_select %p248, %s247, 7
      %s250 = smul.addr %s249, 8
      %s251 = smul.addr %s250, 8
      %s252 = scalar_lea.vmem %s1, %s251
      %s253 = smul.u32 4, %s18
      %s254 = smul.u32 4, %s18
      %p255 = scmp.lt.s32.totalorder %s254, 7
      %s256 = scalar_select %p255, %s254, 7
      %s257 = smul.addr %s256, 8
      %s258 = smul.addr %s257, 8
      %s259 = scalar_lea.vmem %s6, %s258
      %s260 = smul.u32 4, %s18
      %v261 = vld [vmem:[%s252] sm:$0xff]
      %v262 = vld [vmem:[%s252 + $0x8] sm:$0xff]
      %v263 = vld [vmem:[%s252 + $0x10] sm:$0xff]
      %v264 = vld [vmem:[%s252 + $0x18] sm:$0xff]
      %v265 = vld [vmem:[%s252 + $0x20] sm:$0xff]
      %v266 = vld [vmem:[%s252 + $0x28] sm:$0xff]
      %v267 = vld [vmem:[%s252 + $0x30] sm:$0xff]
      %v268 = vld [vmem:[%s252 + $0x38] sm:$0xff]
      %v269 = vld [vmem:[%s252 + $0x40] sm:$0xff]
      %v270 = vld [vmem:[%s252 + $0x48] sm:$0xff]
      %v271 = vld [vmem:[%s252 + $0x50] sm:$0xff]
      %v272 = vld [vmem:[%s252 + $0x58] sm:$0xff]
      %v273 = vld [vmem:[%s252 + $0x60] sm:$0xff]
      %v274 = vld [vmem:[%s252 + $0x68] sm:$0xff]
      %v275 = vld [vmem:[%s252 + $0x70] sm:$0xff]
      %v276 = vld [vmem:[%s252 + $0x78] sm:$0xff]
      %v277 = vld [vmem:[%s252 + $0x80] sm:$0xff]
      %v278 = vld [vmem:[%s252 + $0x88] sm:$0xff]
      %v279 = vld [vmem:[%s252 + $0x90] sm:$0xff]
      %v280 = vld [vmem:[%s252 + $0x98] sm:$0xff]
      %v281 = vld [vmem:[%s252 + $0xa0] sm:$0xff]
      %v282 = vld [vmem:[%s252 + $0xa8] sm:$0xff]
      %v283 = vld [vmem:[%s252 + $0xb0] sm:$0xff]
      %v284 = vld [vmem:[%s252 + $0xb8] sm:$0xff]
      %v285 = vld [vmem:[%s252 + $0xc0] sm:$0xff]
      %v286 = vld [vmem:[%s252 + $0xc8] sm:$0xff]
      %v287 = vld [vmem:[%s252 + $0xd0] sm:$0xff]
      %v288 = vld [vmem:[%s252 + $0xd8] sm:$0xff]
      %v289 = vld [vmem:[%s252 + $0xe0] sm:$0xff]
      %v290 = vld [vmem:[%s252 + $0xe8] sm:$0xff]
      %v291 = vld [vmem:[%s252 + $0xf0] sm:$0xff]
      %v292 = vld [vmem:[%s252 + $0xf8] sm:$0xff]
      %v293 = vadd.f32 %v261, %v262
      %294 = vadd.xlane.f32.xlu0 %v293
      %v295 = vpop.xlane.xlu0 %294
      %v296 = vadd.f32 %v263, %v264
      %297 = vadd.xlane.f32.xlu0 %v296
      %v298 = vpop.xlane.xlu0 %297
      %v299 = vadd.f32 %v265, %v266
      %300 = vadd.xlane.f32.xlu0 %v299
      %v301 = vpop.xlane.xlu0 %300
      %v302 = vadd.f32 %v267, %v268
      %303 = vadd.xlane.f32.xlu0 %v302
      %v304 = vpop.xlane.xlu0 %303
      %v305 = vadd.f32 %v269, %v270
      %306 = vadd.xlane.f32.xlu0 %v305
      %v307 = vpop.xlane.xlu0 %306
      %v308 = vadd.f32 %v271, %v272
      %309 = vadd.xlane.f32.xlu0 %v308
      %v310 = vpop.xlane.xlu0 %309
      %v311 = vadd.f32 %v273, %v274
      %312 = vadd.xlane.f32.xlu0 %v311
      %v313 = vpop.xlane.xlu0 %312
      %v314 = vadd.f32 %v275, %v276
      %315 = vadd.xlane.f32.xlu0 %v314
      %v316 = vpop.xlane.xlu0 %315
      %v317 = vadd.f32 %v277, %v278
      %318 = vadd.xlane.f32.xlu0 %v317
      %v319 = vpop.xlane.xlu0 %318
      %v320 = vadd.f32 %v279, %v280
      %321 = vadd.xlane.f32.xlu0 %v320
      %v322 = vpop.xlane.xlu0 %321
      %v323 = vadd.f32 %v281, %v282
      %324 = vadd.xlane.f32.xlu0 %v323
      %v325 = vpop.xlane.xlu0 %324
      %v326 = vadd.f32 %v283, %v284
      %327 = vadd.xlane.f32.xlu0 %v326
      %v328 = vpop.xlane.xlu0 %327
      %v329 = vadd.f32 %v285, %v286
      %330 = vadd.xlane.f32.xlu0 %v329
      %v331 = vpop.xlane.xlu0 %330
      %v332 = vadd.f32 %v287, %v288
      %333 = vadd.xlane.f32.xlu0 %v332
      %v334 = vpop.xlane.xlu0 %333
      %v335 = vadd.f32 %v289, %v290
      %336 = vadd.xlane.f32.xlu0 %v335
      %v337 = vpop.xlane.xlu0 %336
      %v338 = vadd.f32 %v291, %v292
      %339 = vadd.xlane.f32.xlu0 %v338
      %v340 = vpop.xlane.xlu0 %339
      %v341 = vmul.f32 %v295, 0.00390625
      %v342 = vmul.f32 %v298, 0.00390625
      %v343 = vmul.f32 %v301, 0.00390625
      %v344 = vmul.f32 %v304, 0.00390625
      %v345 = vmul.f32 %v307, 0.00390625
      %v346 = vmul.f32 %v310, 0.00390625
      %v347 = vmul.f32 %v313, 0.00390625
      %v348 = vmul.f32 %v316, 0.00390625
      %v349 = vmul.f32 %v319, 0.00390625
      %v350 = vmul.f32 %v322, 0.00390625
      %v351 = vmul.f32 %v325, 0.00390625
      %v352 = vmul.f32 %v328, 0.00390625
      %v353 = vmul.f32 %v331, 0.00390625
      %v354 = vmul.f32 %v334, 0.00390625
      %v355 = vmul.f32 %v337, 0.00390625
      %v356 = vmul.f32 %v340, 0.00390625
      %s357 = sld [smem:[#allocation2]]
      %v358 = vld [vmem:[%s2] sm:$0xff]
      %v359 = vld [vmem:[%s3] sm:$0xff]
      %361 = vset.pattern.permute.xlu0 0
      %362 = vperm.xlu0 %361, %v359
      %v363 = vpop.permute.xlu0 %362
      %v381 = vlaneseq
      %v382 = vand.u32 %v381, 127
      %v383 = vlaneseq
      %v384 = vshrl.u32 %v383, 7
      %v385 = vsub.s32 %v382, %v384
      %v386 = vrot.slane %v341, %v385
      %v387 = vadd.s32 %v382, 4294967288
      %v388 = vlaneseq
      %v389 = vshrl.u32 %v388, 7
      %v390 = vsub.s32 %v387, %v389
      %v391 = vrot.slane %v342, %v390
      %vm392 = vcmask 130112
      %v393 = vsel %vm392, %v391, %v386
      %v394 = vadd.s32 %v382, 4294967280
      %v395 = vlaneseq
      %v396 = vshrl.u32 %v395, 7
      %v397 = vsub.s32 %v394, %v396
      %v398 = vrot.slane %v343, %v397
      %vm399 = vcmask 195712
      %v400 = vsel %vm399, %v398, %v393
      %v401 = vadd.s32 %v382, 4294967272
      %v402 = vlaneseq
      %v403 = vshrl.u32 %v402, 7
      %v404 = vsub.s32 %v401, %v403
      %v405 = vrot.slane %v344, %v404
      %vm406 = vcmask 261312
      %v407 = vsel %vm406, %v405, %v400
      %v408 = vlaneseq
      %v409 = vshrl.u32 %v408, 7
      %v410 = vsub.s32 %v382, %v409
      %v411 = vrot.slane %v345, %v410
      %v412 = vlaneseq
      %v413 = vshrl.u32 %v412, 7
      %v414 = vsub.s32 %v387, %v413
      %v415 = vrot.slane %v346, %v414
      %v416 = vsel %vm392, %v415, %v411
      %v417 = vlaneseq
      %v418 = vshrl.u32 %v417, 7
      %v419 = vsub.s32 %v394, %v418
      %v420 = vrot.slane %v347, %v419
      %v421 = vsel %vm399, %v420, %v416
      %v422 = vlaneseq
      %v423 = vshrl.u32 %v422, 7
      %v424 = vsub.s32 %v401, %v423
      %v425 = vrot.slane %v348, %v424
      %v426 = vsel %vm406, %v425, %v421
      %v427 = vlaneseq
      %v428 = vshrl.u32 %v427, 7
      %v429 = vsub.s32 %v382, %v428
      %v430 = vrot.slane %v349, %v429
      %v431 = vlaneseq
      %v432 = vshrl.u32 %v431, 7
      %v433 = vsub.s32 %v387, %v432
      %v434 = vrot.slane %v350, %v433
      %v435 = vsel %vm392, %v434, %v430
      %v436 = vlaneseq
      %v437 = vshrl.u32 %v436, 7
      %v438 = vsub.s32 %v394, %v437
      %v439 = vrot.slane %v351, %v438
      %v440 = vsel %vm399, %v439, %v435
      %v441 = vlaneseq
      %v442 = vshrl.u32 %v441, 7
      %v443 = vsub.s32 %v401, %v442
      %v444 = vrot.slane %v352, %v443
      %v445 = vsel %vm406, %v444, %v440
      %v446 = vlaneseq
      %v447 = vshrl.u32 %v446, 7
      %v448 = vsub.s32 %v382, %v447
      %v449 = vrot.slane %v353, %v448
      %v450 = vlaneseq
      %v451 = vshrl.u32 %v450, 7
      %v452 = vsub.s32 %v387, %v451
      %v453 = vrot.slane %v354, %v452
      %v454 = vsel %vm392, %v453, %v449
      %v455 = vlaneseq
      %v456 = vshrl.u32 %v455, 7
      %v457 = vsub.s32 %v394, %v456
      %v458 = vrot.slane %v355, %v457
      %v459 = vsel %vm399, %v458, %v454
      %v460 = vlaneseq
      %v461 = vshrl.u32 %v460, 7
      %v462 = vsub.s32 %v401, %v461
      %v463 = vrot.slane %v356, %v462
      %v464 = vsel %vm406, %v463, %v459
      %vm465 = vcmask 1041409
      %v466 = vsel %vm465, %v426, %v407
      %vm467 = vcmask 1042434
      %v468 = vsel %vm467, %v445, %v466
      %vm469 = vcmask 1043459
      %v470 = vsel %vm469, %v464, %v468
      %vm471 = vcmask 261120
      %v473 = vsel %vm471, %v358, 0
      %v475 = vsel %vm471, %v470, 0
      %477 = vmatprep.subr.mxu0 0.0
      %478 = vmatpush1.xpose.msra.mxu0 %v475
      %479 = vmatprep.subr.mxu0 0.0
      %480 = vmatpush1.xpose.msra.mxu0 0.0
      %481 = vmatprep.subr.mxu0 0.0
      %482 = vmatpush1.xpose.msra.mxu0 0.0
      %483 = vmatprep.subr.mxu0 0.0
      %484 = vmatpush1.xpose.msra.mxu0 0.0
      %485 = vmatprep.subr.mxu0 0.0
      %486 = vmatpush1.xpose.msra.mxu0 0.0
      %487 = vmatprep.subr.mxu0 0.0
      %488 = vmatpush1.xpose.msra.mxu0 0.0
      %489 = vmatprep.subr.mxu0 0.0
      %490 = vmatpush1.xpose.msra.mxu0 0.0
      %491 = vmatprep.subr.mxu0 0.0
      %492 = vmatpush1.xpose.msra.mxu0 0.0
      %493 = vmatprep.subr.mxu0 0.0
      %494 = vmatpush1.xpose.msra.mxu0 0.0
      %495 = vmatprep.subr.mxu0 0.0
      %496 = vmatpush1.xpose.msra.mxu0 0.0
      %497 = vmatprep.subr.mxu0 0.0
      %498 = vmatpush1.xpose.msra.mxu0 0.0
      %499 = vmatprep.subr.mxu0 0.0
      %500 = vmatpush1.xpose.msra.mxu0 0.0
      %501 = vmatprep.subr.mxu0 0.0
      %502 = vmatpush1.xpose.msra.mxu0 0.0
      %503 = vmatprep.subr.mxu0 0.0
      %504 = vmatpush1.xpose.msra.mxu0 0.0
      %505 = vmatprep.subr.mxu0 0.0
      %506 = vmatpush1.xpose.msra.mxu0 0.0
      %507 = vmatprep.subr.mxu0 0.0
      %508 = vmatpush1.xpose.msra.mxu0 0.0
      %509 = vmatprep.subr.mxu0 0.0
      %510 = vmatpush1.xpose.msra.mxu0 0.0
      %511 = vmatprep.subr.mxu0 0.0
      %512 = vmatpush1.xpose.msra.mxu0 0.0
      %513 = vmatprep.subr.mxu0 0.0
      %514 = vmatpush1.xpose.msra.mxu0 0.0
      %515 = vmatprep.subr.mxu0 0.0
      %516 = vmatpush1.xpose.msra.mxu0 0.0
      %517 = vmatprep.subr.mxu0 0.0
      %518 = vmatpush1.xpose.msra.mxu0 0.0
      %519 = vmatprep.subr.mxu0 0.0
      %520 = vmatpush1.xpose.msra.mxu0 0.0
      %521 = vmatprep.subr.mxu0 0.0
      %522 = vmatpush1.xpose.msra.mxu0 0.0
      %523 = vmatprep.subr.mxu0 0.0
      %524 = vmatpush1.xpose.msra.mxu0 0.0
      %525 = vmatprep.subr.mxu0 0.0
      %526 = vmatpush1.xpose.msra.mxu0 0.0
      %527 = vmatprep.subr.mxu0 0.0
      %528 = vmatpush1.xpose.msra.mxu0 0.0
      %529 = vmatprep.subr.mxu0 0.0
      %530 = vmatpush1.xpose.msra.mxu0 0.0
      %531 = vmatprep.subr.mxu0 0.0
      %532 = vmatpush1.xpose.msra.mxu0 0.0
      %533 = vmatprep.subr.mxu0 0.0
      %534 = vmatpush1.xpose.msra.mxu0 0.0
      %535 = vmatprep.subr.mxu0 0.0
      %536 = vmatpush1.xpose.msra.mxu0 0.0
      %537 = vmatprep.subr.mxu0 0.0
      %538 = vmatpush1.xpose.msra.mxu0 0.0
      %539 = vmatprep.subr.mxu0 0.0
      %540 = vmatpush1.xpose.msra.mxu0 0.0
      %541 = vmatprep.mubr.f32.mxu0 0.0
      %542 = vmatmul.mubr.f32.gmra.mrb[0].mxu0 %v473
      %v543 = vpop.f32.mrb[0].mxu0
      %v544 = vadd.f32 %v363, %v543
      %v545 = vpop.f32.mrb[0].mxu0
      %546 = vdwg.mxu0
      %vm547 = vcmp.ge.f32.partialorder %v544, 0.0
      %v548 = vstv %s357
      %v549 = vmul.f32 %v548, %v544
      %v550 = vsel %vm547, %v544, %v549
      %v551 = vld [vmem:[%s4] sm:$0xff]
      %v552 = vld [vmem:[%s4 + $0x8] sm:$0xff]
      %v553 = vld [vmem:[%s4 + $0x10] sm:$0xff]
      %v554 = vld [vmem:[%s4 + $0x18] sm:$0xff]
      %v555 = vld [vmem:[%s5] sm:$0xff]
      %v556 = vld [vmem:[%s5 + $0x8] sm:$0xff]
      %v557 = vld [vmem:[%s5 + $0x10] sm:$0xff]
      %v558 = vld [vmem:[%s5 + $0x18] sm:$0xff]
      %560 = vset.pattern.permute.xlu0 0
      %561 = vperm.xlu0 %560, %v555
      %v562 = vpop.permute.xlu0 %561
      %565 = vset.pattern.permute.xlu0 0
      %566 = vperm.xlu0 %565, %v556
      %v567 = vpop.permute.xlu0 %566
      %570 = vset.pattern.permute.xlu0 0
      %571 = vperm.xlu0 %570, %v557
      %v572 = vpop.permute.xlu0 %571
      %575 = vset.pattern.permute.xlu0 0
      %576 = vperm.xlu0 %575, %v558
      %v577 = vpop.permute.xlu0 %576
      %vm579 = vcmask 64512
      %v581 = vsel %vm579, %v551, 0
      %v584 = vsel %vm579, %v552, 0
      %v587 = vsel %vm579, %v553, 0
      %v590 = vsel %vm579, %v554, 0
      %592 = vmatprep.subr.mxu0 0.0
      %593 = vmatpush1.msra.mxu0 %v550
      %594 = vmatprep.subr.mxu0 0.0
      %595 = vmatpush1.msra.mxu0 0.0
      %596 = vmatprep.subr.mxu0 0.0
      %597 = vmatpush1.msra.mxu0 0.0
      %598 = vmatprep.subr.mxu0 0.0
      %599 = vmatpush1.msra.mxu0 0.0
      %600 = vmatprep.subr.mxu0 0.0
      %601 = vmatpush1.msra.mxu0 0.0
      %602 = vmatprep.subr.mxu0 0.0
      %603 = vmatpush1.msra.mxu0 0.0
      %604 = vmatprep.subr.mxu0 0.0
      %605 = vmatpush1.msra.mxu0 0.0
      %606 = vmatprep.subr.mxu0 0.0
      %607 = vmatpush1.msra.mxu0 0.0
      %608 = vmatprep.subr.mxu0 0.0
      %609 = vmatpush1.msra.mxu0 0.0
      %610 = vmatprep.subr.mxu0 0.0
      %611 = vmatpush1.msra.mxu0 0.0
      %612 = vmatprep.subr.mxu0 0.0
      %613 = vmatpush1.msra.mxu0 0.0
      %614 = vmatprep.subr.mxu0 0.0
      %615 = vmatpush1.msra.mxu0 0.0
      %616 = vmatprep.subr.mxu0 0.0
      %617 = vmatpush1.msra.mxu0 0.0
      %618 = vmatprep.subr.mxu0 0.0
      %619 = vmatpush1.msra.mxu0 0.0
      %620 = vmatprep.subr.mxu0 0.0
      %621 = vmatpush1.msra.mxu0 0.0
      %622 = vmatprep.subr.mxu0 0.0
      %623 = vmatpush1.msra.mxu0 0.0
      %624 = vmatprep.subr.mxu0 0.0
      %625 = vmatpush1.msra.mxu0 0.0
      %626 = vmatprep.subr.mxu0 0.0
      %627 = vmatpush1.msra.mxu0 0.0
      %628 = vmatprep.subr.mxu0 0.0
      %629 = vmatpush1.msra.mxu0 0.0
      %630 = vmatprep.subr.mxu0 0.0
      %631 = vmatpush1.msra.mxu0 0.0
      %632 = vmatprep.subr.mxu0 0.0
      %633 = vmatpush1.msra.mxu0 0.0
      %634 = vmatprep.subr.mxu0 0.0
      %635 = vmatpush1.msra.mxu0 0.0
      %636 = vmatprep.subr.mxu0 0.0
      %637 = vmatpush1.msra.mxu0 0.0
      %638 = vmatprep.subr.mxu0 0.0
      %639 = vmatpush1.msra.mxu0 0.0
      %640 = vmatprep.subr.mxu0 0.0
      %641 = vmatpush1.msra.mxu0 0.0
      %642 = vmatprep.subr.mxu0 0.0
      %643 = vmatpush1.msra.mxu0 0.0
      %644 = vmatprep.subr.mxu0 0.0
      %645 = vmatpush1.msra.mxu0 0.0
      %646 = vmatprep.subr.mxu0 0.0
      %647 = vmatpush1.msra.mxu0 0.0
      %648 = vmatprep.subr.mxu0 0.0
      %649 = vmatpush1.msra.mxu0 0.0
      %650 = vmatprep.subr.mxu0 0.0
      %651 = vmatpush1.msra.mxu0 0.0
      %652 = vmatprep.subr.mxu0 0.0
      %653 = vmatpush1.msra.mxu0 0.0
      %654 = vmatprep.subr.mxu0 0.0
      %655 = vmatpush1.msra.mxu0 0.0
      %656 = vmatprep.mubr.f32.mxu0 0.0
      %657 = vmatmul.mubr.f32.gmra.mrb[0].mxu0 %v581
      %v658 = vpop.f32.mrb[0].mxu0
      %v659 = vadd.f32 %v562, %v658
      %v660 = vpop.f32.mrb[0].mxu0
      %661 = vmatprep.mubr.f32.mxu0 0.0
      %662 = vmatmul.mubr.f32.gmra.mrb[0].mxu0 %v584
      %v663 = vpop.f32.mrb[0].mxu0
      %v664 = vadd.f32 %v567, %v663
      %v665 = vpop.f32.mrb[0].mxu0
      %666 = vmatprep.mubr.f32.mxu0 0.0
      %667 = vmatmul.mubr.f32.gmra.mrb[0].mxu0 %v587
      %v668 = vpop.f32.mrb[0].mxu0
      %v669 = vadd.f32 %v572, %v668
      %v670 = vpop.f32.mrb[0].mxu0
      %671 = vmatprep.mubr.f32.mxu0 0.0
      %672 = vmatmul.mubr.f32.gmra.mrb[0].mxu0 %v590
      %v673 = vpop.f32.mrb[0].mxu0
      %v674 = vadd.f32 %v577, %v673
      %v675 = vpop.f32.mrb[0].mxu0
      %676 = vdwg.mxu0
      %v677 = vxor.u32 %v659, 2147483648
      %v678 = vxor.u32 %v664, 2147483648
      %v679 = vxor.u32 %v669, 2147483648
      %v680 = vxor.u32 %v674, 2147483648
      %v681 = vmul.f32 %v677, 1.442695
      %v682 = vpow.pop %v681
      %v683 = vmul.f32 %v678, 1.442695
      %v684 = vpow.pop %v683
      %v685 = vmul.f32 %v679, 1.442695
      %v686 = vpow.pop %v685
      %v687 = vmul.f32 %v680, 1.442695
      %v688 = vpow.pop %v687
      %v689 = vadd.f32 %v682, 1.0
      %v690 = vadd.f32 %v684, 1.0
      %v691 = vadd.f32 %v686, 1.0
      %v692 = vadd.f32 %v688, 1.0
      %v693 = vrcp.pop %v689
      %v694 = vmul.f32 1.0, %v693
      %v695 = vrcp.pop %v690
      %v696 = vmul.f32 1.0, %v695
      %v697 = vrcp.pop %v691
      %v698 = vmul.f32 1.0, %v697
      %v699 = vrcp.pop %v692
      %v700 = vmul.f32 1.0, %v699
      %v701 = vld [vmem:[%s252] sm:$0xff]
      %v702 = vld [vmem:[%s252 + $0x8] sm:$0xff]
      %v703 = vld [vmem:[%s252 + $0x10] sm:$0xff]
      %v704 = vld [vmem:[%s252 + $0x18] sm:$0xff]
      %v705 = vld [vmem:[%s252 + $0x20] sm:$0xff]
      %v706 = vld [vmem:[%s252 + $0x28] sm:$0xff]
      %v707 = vld [vmem:[%s252 + $0x30] sm:$0xff]
      %v708 = vld [vmem:[%s252 + $0x38] sm:$0xff]
      %710 = vset.pattern.permute.xlu0 0
      %711 = vperm.xlu0 %710, %v694
      %v712 = vpop.permute.xlu0 %711
      %715 = vset.pattern.permute.xlu0 0
      %716 = vperm.xlu0 %715, %v696
      %v717 = vpop.permute.xlu0 %716
      %720 = vset.pattern.permute.xlu0 0
      %721 = vperm.xlu0 %720, %v698
      %v722 = vpop.permute.xlu0 %721
      %725 = vset.pattern.permute.xlu0 0
      %726 = vperm.xlu0 %725, %v700
      %v727 = vpop.permute.xlu0 %726
      %v729 = vmul.f32 %v701, %v712
      %v730 = vmul.f32 %v702, %v712
      %v731 = vmul.f32 %v703, %v717
      %v732 = vmul.f32 %v704, %v717
      %v733 = vmul.f32 %v705, %v722
      %v734 = vmul.f32 %v706, %v722
      %v735 = vmul.f32 %v707, %v727
      %v736 = vmul.f32 %v708, %v727
      %737 = vst [vmem:[%s259] sm:$0xff] %v729
      %738 = vst [vmem:[%s259 + $0x8] sm:$0xff] %v730
      %739 = vst [vmem:[%s259 + $0x10] sm:$0xff] %v731
      %740 = vst [vmem:[%s259 + $0x18] sm:$0xff] %v732
      %741 = vst [vmem:[%s259 + $0x20] sm:$0xff] %v733
      %742 = vst [vmem:[%s259 + $0x28] sm:$0xff] %v734
      %743 = vst [vmem:[%s259 + $0x30] sm:$0xff] %v735
      %744 = vst [vmem:[%s259 + $0x38] sm:$0xff] %v736
      %s745 = scalar_lea.vmem %s252, 64
      %v746 = vld [vmem:[%s745] sm:$0xff]
      %v747 = vld [vmem:[%s745 + $0x8] sm:$0xff]
      %v748 = vld [vmem:[%s745 + $0x10] sm:$0xff]
      %v749 = vld [vmem:[%s745 + $0x18] sm:$0xff]
      %v750 = vld [vmem:[%s745 + $0x20] sm:$0xff]
      %v751 = vld [vmem:[%s745 + $0x28] sm:$0xff]
      %v752 = vld [vmem:[%s745 + $0x30] sm:$0xff]
      %v753 = vld [vmem:[%s745 + $0x38] sm:$0xff]
      %754 = vset.pattern.permute.xlu0 1
      %755 = vperm.xlu0 %754, %v694
      %v756 = vpop.permute.xlu0 %755
      %758 = vset.pattern.permute.xlu0 1
      %759 = vperm.xlu0 %758, %v696
      %v760 = vpop.permute.xlu0 %759
      %762 = vset.pattern.permute.xlu0 1
      %763 = vperm.xlu0 %762, %v698
      %v764 = vpop.permute.xlu0 %763
      %766 = vset.pattern.permute.xlu0 1
      %767 = vperm.xlu0 %766, %v700
      %v768 = vpop.permute.xlu0 %767
      %v770 = vmul.f32 %v746, %v756
      %v771 = vmul.f32 %v747, %v756
      %v772 = vmul.f32 %v748, %v760
      %v773 = vmul.f32 %v749, %v760
      %v774 = vmul.f32 %v750, %v764
      %v775 = vmul.f32 %v751, %v764
      %v776 = vmul.f32 %v752, %v768
      %v777 = vmul.f32 %v753, %v768
      %s778 = scalar_lea.vmem %s259, 64
      %779 = vst [vmem:[%s778] sm:$0xff] %v770
      %780 = vst [vmem:[%s778 + $0x8] sm:$0xff] %v771
      %781 = vst [vmem:[%s778 + $0x10] sm:$0xff] %v772
      %782 = vst [vmem:[%s778 + $0x18] sm:$0xff] %v773
      %783 = vst [vmem:[%s778 + $0x20] sm:$0xff] %v774
      %784 = vst [vmem:[%s778 + $0x28] sm:$0xff] %v775
      %785 = vst [vmem:[%s778 + $0x30] sm:$0xff] %v776
      %786 = vst [vmem:[%s778 + $0x38] sm:$0xff] %v777
      %s787 = scalar_lea.vmem %s252, 128
      %v788 = vld [vmem:[%s787] sm:$0xff]
      %v789 = vld [vmem:[%s787 + $0x8] sm:$0xff]
      %v790 = vld [vmem:[%s787 + $0x10] sm:$0xff]
      %v791 = vld [vmem:[%s787 + $0x18] sm:$0xff]
      %v792 = vld [vmem:[%s787 + $0x20] sm:$0xff]
      %v793 = vld [vmem:[%s787 + $0x28] sm:$0xff]
      %v794 = vld [vmem:[%s787 + $0x30] sm:$0xff]
      %v795 = vld [vmem:[%s787 + $0x38] sm:$0xff]
      %796 = vset.pattern.permute.xlu0 2
      %797 = vperm.xlu0 %796, %v694
      %v798 = vpop.permute.xlu0 %797
      %800 = vset.pattern.permute.xlu0 2
      %801 = vperm.xlu0 %800, %v696
      %v802 = vpop.permute.xlu0 %801
      %804 = vset.pattern.permute.xlu0 2
      %805 = vperm.xlu0 %804, %v698
      %v806 = vpop.permute.xlu0 %805
      %808 = vset.pattern.permute.xlu0 2
      %809 = vperm.xlu0 %808, %v700
      %v810 = vpop.permute.xlu0 %809
      %v812 = vmul.f32 %v788, %v798
      %v813 = vmul.f32 %v789, %v798
      %v814 = vmul.f32 %v790, %v802
      %v815 = vmul.f32 %v791, %v802
      %v816 = vmul.f32 %v792, %v806
      %v817 = vmul.f32 %v793, %v806
      %v818 = vmul.f32 %v794, %v810
      %v819 = vmul.f32 %v795, %v810
      %s820 = scalar_lea.vmem %s259, 128
      %821 = vst [vmem:[%s820] sm:$0xff] %v812
      %822 = vst [vmem:[%s820 + $0x8] sm:$0xff] %v813
      %823 = vst [vmem:[%s820 + $0x10] sm:$0xff] %v814
      %824 = vst [vmem:[%s820 + $0x18] sm:$0xff] %v815
      %825 = vst [vmem:[%s820 + $0x20] sm:$0xff] %v816
      %826 = vst [vmem:[%s820 + $0x28] sm:$0xff] %v817
      %827 = vst [vmem:[%s820 + $0x30] sm:$0xff] %v818
      %828 = vst [vmem:[%s820 + $0x38] sm:$0xff] %v819
      %s829 = scalar_lea.vmem %s252, 192
      %v830 = vld [vmem:[%s829] sm:$0xff]
      %v831 = vld [vmem:[%s829 + $0x8] sm:$0xff]
      %v832 = vld [vmem:[%s829 + $0x10] sm:$0xff]
      %v833 = vld [vmem:[%s829 + $0x18] sm:$0xff]
      %v834 = vld [vmem:[%s829 + $0x20] sm:$0xff]
      %v835 = vld [vmem:[%s829 + $0x28] sm:$0xff]
      %v836 = vld [vmem:[%s829 + $0x30] sm:$0xff]
      %v837 = vld [vmem:[%s829 + $0x38] sm:$0xff]
      %838 = vset.pattern.permute.xlu0 3
      %839 = vperm.xlu0 %838, %v694
      %v840 = vpop.permute.xlu0 %839
      %842 = vset.pattern.permute.xlu0 3
      %843 = vperm.xlu0 %842, %v696
      %v844 = vpop.permute.xlu0 %843
      %846 = vset.pattern.permute.xlu0 3
      %847 = vperm.xlu0 %846, %v698
      %v848 = vpop.permute.xlu0 %847
      %850 = vset.pattern.permute.xlu0 3
      %851 = vperm.xlu0 %850, %v700
      %v852 = vpop.permute.xlu0 %851
      %v854 = vmul.f32 %v830, %v840
      %v855 = vmul.f32 %v831, %v840
      %v856 = vmul.f32 %v832, %v844
      %v857 = vmul.f32 %v833, %v844
      %v858 = vmul.f32 %v834, %v848
      %v859 = vmul.f32 %v835, %v848
      %v860 = vmul.f32 %v836, %v852
      %v861 = vmul.f32 %v837, %v852
      %s862 = scalar_lea.vmem %s259, 192
      %863 = vst [vmem:[%s862] sm:$0xff] %v854
      %864 = vst [vmem:[%s862 + $0x8] sm:$0xff] %v855
      %865 = vst [vmem:[%s862 + $0x10] sm:$0xff] %v856
      %866 = vst [vmem:[%s862 + $0x18] sm:$0xff] %v857
      %867 = vst [vmem:[%s862 + $0x20] sm:$0xff] %v858
      %868 = vst [vmem:[%s862 + $0x28] sm:$0xff] %v859
      %869 = vst [vmem:[%s862 + $0x30] sm:$0xff] %v860
      %870 = vst [vmem:[%s862 + $0x38] sm:$0xff] %v861
      %s871 = smul.u32 4, %s18
      %p872 = scmp.lt.s32.totalorder %s871, 7
      %s873 = scalar_select %p872, %s871, 7
      %s874 = smul.addr %s873, 8
      %s875 = smul.addr %s874, 8
      %s876 = scalar_lea.vmem %s6, %s875
      // Predicated region
      $region45: #{se_block.1} parent=43 // pred_check
        %p877 = pneg %p167
      $region46: #{se_block.1} parent=43 // pred_check_branch
        %879 = sbr.rel (%p877) target = $region48
      $region47: #{se_block.1} parent=43 // pred_region
        %s880 = smul.u32 4, %s18
      $region48: #{se_block.1} parent=43 // pred_fallthru
        _
    $region44: #{se_block.1} parent=5 // pred_fallthru
      _
    %p881 = scmp.le.s32.totalorder 2, %s13
    // Predicated region
    $region49: #{se_block.1} parent=5 // pred_check
      %p882 = pneg %p881
    $region50: #{se_block.1} parent=5 // pred_check_branch
      %884 = sbr.rel (%p882) target = $region52
    $region51: #{se_block.1} parent=5 // pred_region
      %s885 = ssub.s32 %s13, 2
      // Predicated region
      $region53: #{se_block.1} parent=51 // pred_check
        %p886 = pneg %p173
      $region54: #{se_block.1} parent=51 // pred_check_branch
        %888 = sbr.rel (%p886) target = $region56
      $region55: #{se_block.1} parent=51 // pred_region
        %s889 = smul.u32 4, %s19
        %p890 = scmp.lt.s32.totalorder %s889, 7
        %s891 = scalar_select %p890, %s889, 7
        %s892 = smul.addr %s891, 8
        %s893 = smul.addr %s892, 8
        %s894 = scalar_lea.vmem %s6, %s893
      $region56: #{se_block.1} parent=51 // pred_fallthru
        _
    $region52: #{se_block.1} parent=5 // pred_fallthru
      _
  $region6: #{se_block.1} parent=0 // loop_footer
    %s17 = sadd.s32 1, %s13
  $region7: #{se_block.1} parent=0 // loop_footer_branch
    %12 = sbr.rel target = $region3
  $region8: #{se_block.1} parent=0 // loop_exit
    _

</llo_original>
